<compile_context>
chip_gen: v5e
topology: v5e:2x2
jax: 0.10.0
libtpu: 0.0.40
codegen_flags: <defaults>
</compile_context>

<pallas_src>
import functools

import jax
import jax.numpy as jnp
from jax import lax
from jax.experimental import pallas as pl
from jax.experimental.pallas import tpu as pltpu


# --------------------------------------------------------------------------- #
# Hardware-aware sizing helpers                                               #
# --------------------------------------------------------------------------- #
def _tpu_vmem_capacity_bytes():
    """Physical VMEM per core; conservative 64 MiB (v7x) fallback."""
    try:
        return int(pltpu.get_tpu_info().vmem_capacity_bytes)
    except Exception:  # mock backends / attribute differences
        return 64 * 1024 * 1024


def _pick_vmem_limit(vmem_capacity):
    if vmem_capacity >= 128 * 1024 * 1024:      # v5e / v6e
        return 96 * 1024 * 1024
    # v7x (64 MiB physical) or unknown: stay well below the physical limit.
    return min(40 * 1024 * 1024, int(vmem_capacity * 5 // 8))


def _pick_t_chunk(T, b_blk, hidden, vmem_limit, requested=None):
    """Largest chunk whose double-buffered gx/y slabs (+ residents) fit VMEM."""
    if requested is not None:
        return max(1, min(int(requested), T))
    per_t = 2 * (b_blk * (2 * hidden) * 4 + b_blk * hidden * 4)  # 2x(gx + y) f32
    resident = hidden * (2 * hidden) * 4 + 3 * b_blk * hidden * 4  # weights + h0 + scratch
    budget = vmem_limit // 2 - resident                            # headroom
    return int(max(1, min(T, 64, budget // max(per_t, 1))))


# --------------------------------------------------------------------------- #
# Kernel                                                                      #
# --------------------------------------------------------------------------- #
def _alphat_chunk_kernel(gx_ref, h0_ref, wh_ref, y_ref, h_scratch, *,
                         t_chunk, hidden):
    """One grid step == one chunk of T_CHUNK time steps for one batch block.

    gx_ref : (T_CHUNK, B_BLK, 2H)  hoisted input projections (+ all biases)
    h0_ref : (B_BLK, H)            initial hidden state for this batch block
    wh_ref : (H, 2H)               fused recurrent weights [W_hh^T | W_ha^T]
    y_ref  : (T_CHUNK, B_BLK, H)   hidden-state outputs for this chunk
    h_scratch : (B_BLK, H) VMEM    hidden state carried across time chunks
    """
    c = pl.program_id(1)  # time-chunk axis (innermost, sequential)

    @pl.when(c == 0)
    def _():
        h_scratch[...] = h0_ref[...]

    def step(s, h):
        # One fused MXU op per step on the serial critical path.  Operands in
        # wh_ref.dtype (bf16 default -> single MXU pass); f32 accumulate.  The
        # weight stays a Ref access (no loop-live hoisted value -> no spills).
        g = gx_ref[s] + jnp.dot(h.astype(wh_ref.dtype), wh_ref[...],
                                preferred_element_type=jnp.float32)
        h_tilde = jnp.tanh(g[:, :hidden])
        # sigmoid(a) == 0.5*(1 + tanh(a/2)): one EUP pass instead of exp+recip.
        alpha = 0.5 * (1.0 + jnp.tanh(0.5 * g[:, hidden:]))
        h_new = alpha * h_tilde + (1.0 - alpha) * h
        y_ref[s] = h_new.astype(y_ref.dtype)  # output DMA'd as one chunk slab
        return h_new

    h_scratch[...] = lax.fori_loop(0, t_chunk, step, h_scratch[...],
                                   unroll=min(t_chunk, 8))


# --------------------------------------------------------------------------- #
# Per-layer wrapper                                                           #
# --------------------------------------------------------------------------- #
def _run_layer(x_tbi, h0, params, *, matmul_dtype=jnp.bfloat16, t_chunk=None):
    """Run one AlphatRNNCell over the whole sequence.

    x_tbi: (T, B, I) f32, h0: (B, H) f32.  Returns y: (T, B, H) f32.
    """
    T, B, _ = x_tbi.shape
    H = h0.shape[1]

    # ---- Hoisted, time-independent input projections: one big GEMM (XLA). ----
    #   gx[t] = x_t @ [W_ih^T | W_ia^T] + [b_ih + b_hh | b_ia + b_ha]
    w_x = jnp.concatenate([params["W_ih"].T, params["W_ia"].T], axis=1)  # (I,2H)
    b_x = jnp.concatenate([params["b_ih"] + params["b_hh"],
                           params["b_ia"] + params["b_ha"]])             # (2H,)
    gx = jnp.einsum("tbi,ij->tbj", x_tbi.astype(jnp.float32), w_x,
                    preferred_element_type=jnp.float32) + b_x            # (T,B,2H)

    # ---- Fused recurrent weights (single MXU op per step in the kernel). ----
    w_h = jnp.concatenate([params["W_hh"].T, params["W_ha"].T],
                          axis=1).astype(matmul_dtype)                   # (H,2H)

    # Batch-block split for megacore (v7x): only when each block keeps full
    # sublane utilisation (multiple of 8).  Harmless single block otherwise.
    n_b = 2 if (B >= 16 and B % 16 == 0) else 1
    b_blk = B // n_b

    vmem_limit = _pick_vmem_limit(_tpu_vmem_capacity_bytes())
    t_chunk = _pick_t_chunk(T, b_blk, H, vmem_limit, requested=t_chunk)

    n_chunks = pl.cdiv(T, t_chunk)
    T_pad = n_chunks * t_chunk
    if T_pad != T:
        # Trailing zero-padding: padded steps still evolve h_scratch, but their
        # outputs are sliced off below and no later chunk / consumer reads the
        # scratch after the last valid step, so this is harmless by design.
        gx = jnp.pad(gx, ((0, T_pad - T), (0, 0), (0, 0)))

    kernel = functools.partial(_alphat_chunk_kernel, t_chunk=t_chunk, hidden=H)

    y = pl.pallas_call(
        kernel,
        out_shape=jax.ShapeDtypeStruct((T_pad, B, H), jnp.float32),
        grid_spec=pltpu.PrefetchScalarGridSpec(
            num_scalar_prefetch=0,
            grid=(n_b, n_chunks),  # (parallel batch blocks, sequential chunks)
            in_specs=[
                pl.BlockSpec((t_chunk, b_blk, 2 * H), lambda b, c: (c, b, 0)),
                pl.BlockSpec((b_blk, H), lambda b, c: (b, 0)),
                # Constant index map -> resident; single-buffered so the weight
                # does not burn a useless second pipeline buffer at large H.
                pl.BlockSpec((H, 2 * H), lambda b, c: (0, 0),
                             pipeline_mode=pl.Buffered(1)),
            ],
            out_specs=pl.BlockSpec((t_chunk, b_blk, H), lambda b, c: (c, b, 0)),
            scratch_shapes=[pltpu.VMEM((b_blk, H), jnp.float32)],
        ),
        compiler_params=pltpu.CompilerParams(
            dimension_semantics=("parallel", "arbitrary"),
            vmem_limit_bytes=vmem_limit,
        ),
    )(gx, h0.astype(jnp.float32), w_h)
    return y[:T]


# --------------------------------------------------------------------------- #
# Full module forward                                                         #
# --------------------------------------------------------------------------- #
def alphat_rnn_forward(x_bti, params_per_layer, hx=None, *,
                       matmul_dtype=jnp.bfloat16, t_chunk=None):
    """Mirrors AlphatRNN.forward.

    x_bti: (B, T, input_size).  Returns (outputs (B,T,H), [final h (B,H)/layer]).
    """
    B = x_bti.shape[0]
    H = params_per_layer[0]["W_hh"].shape[0]
    if hx is None:
        hx = [jnp.zeros((B, H), jnp.float32) for _ in params_per_layer]

    # Stacked-RNN: running layer-by-layer over the full sequence is equivalent
    # to the reference per-timestep layer loop (no cross-layer time coupling).
    x_tbi = jnp.transpose(x_bti, (1, 0, 2)).astype(jnp.float32)  # time-major
    final_h = []
    for i, params in enumerate(params_per_layer):
        y_tbh = _run_layer(x_tbi, hx[i], params,
                           matmul_dtype=matmul_dtype, t_chunk=t_chunk)
        final_h.append(y_tbh[-1])
        x_tbi = y_tbh
    outputs = jnp.transpose(x_tbi, (1, 0, 2))                    # (B, T, H)
    return outputs, final_h


# --------------------------------------------------------------------------- #
# Pure-JAX reference of the PyTorch module (for validation)                   #
# --------------------------------------------------------------------------- #
def _reference_forward(x_bti, params_per_layer, hx=None):
    B, T, _ = x_bti.shape
    H = params_per_layer[0]["W_hh"].shape[0]
    if hx is None:
        hx = [jnp.zeros((B, H), jnp.float32) for _ in params_per_layer]
    hx = list(hx)
    outs = []
    for t in range(T):
        x = x_bti[:, t, :]
        for i, p in enumerate(params_per_layer):
            h = hx[i]
            h_tilde = jnp.tanh(x @ p["W_ih"].T + p["b_ih"]
                               + h @ p["W_hh"].T + p["b_hh"])
            alpha = jax.nn.sigmoid(x @ p["W_ia"].T + p["b_ia"]
                                   + h @ p["W_ha"].T + p["b_ha"])
            hx[i] = alpha * h_tilde + (1.0 - alpha) * h
            x = hx[i]
        outs.append(x[:, None, :])
    return jnp.concatenate(outs, axis=1), hx


def init_params(key, input_size, hidden_size, num_layers):
    """Deterministic uniform(-1/sqrt(H), 1/sqrt(H)) init, PyTorch-style shapes."""
    params = []
    bound = 1.0 / jnp.sqrt(jnp.float32(hidden_size))
    for layer in range(num_layers):
        in_sz = input_size if layer == 0 else hidden_size
        names_shapes = [
            ("W_ih", (hidden_size, in_sz)), ("W_hh", (hidden_size, hidden_size)),
            ("b_ih", (hidden_size,)), ("b_hh", (hidden_size,)),
            ("W_ia", (hidden_size, in_sz)), ("W_ha", (hidden_size, hidden_size)),
            ("b_ia", (hidden_size,)), ("b_ha", (hidden_size,)),
        ]
        layer_params = {}
        for name, shape in names_shapes:
            key, sub = jax.random.split(key)
            layer_params[name] = jax.random.uniform(
                sub, shape, jnp.float32, minval=-bound, maxval=bound)
        params.append(layer_params)
    return params


if __name__ == "__main__":
    B, T, I, H, L = 2, 8, 16, 32, 2

    key = jax.random.PRNGKey(0)
    key, kx = jax.random.split(key)
    x = jax.random.normal(kx, (B, T, I), jnp.float32)
    params = init_params(key, I, H, L)

    # Performance default: bf16 MXU operands on the recurrent matmul.
    outputs, hx = alphat_rnn_forward(x, params)
    outputs = jax.block_until_ready(outputs)
    hx = [jax.block_until_ready(h) for h in hx]

    assert outputs.shape == (B, T, H)
    assert all(h.shape == (B, H) for h in hx)
    assert bool(jnp.all(jnp.isfinite(outputs)))

    ref_out, ref_hx = _reference_forward(x, params)

    # Exact-parity path (f32 MXU operands): strict check vs the reference.
    out_f32, hx_f32 = alphat_rnn_forward(x, params, matmul_dtype=jnp.float32)
    out_f32 = jax.block_until_ready(out_f32)
    assert bool(jnp.allclose(out_f32, ref_out, atol=1e-3, rtol=1e-3))
    assert all(bool(jnp.allclose(a, b, atol=1e-3, rtol=1e-3))
               for a, b in zip(hx_f32, ref_hx))

    # bf16-operand fast path: same forward semantics, relaxed tolerance.
    assert bool(jnp.allclose(outputs, ref_out, atol=5e-2, rtol=5e-2))
    assert all(bool(jnp.allclose(a, b, atol=5e-2, rtol=5e-2))
               for a, b in zip(hx, ref_hx))

    print("KERNEL_OK")
</pallas_src>

<mosaic_0001>
module attributes {stable_mosaic.version = 11 : i64} {
  func.func @_alphat_chunk_kernel(%arg0: i32, %arg1: i32, %arg2: memref<8x2x64xf32, #tpu.memory_space<vmem>>, %arg3: memref<2x32xf32, #tpu.memory_space<vmem>>, %arg4: memref<32x64xbf16, #tpu.memory_space<vmem>>, %arg5: memref<8x2x32xf32, #tpu.memory_space<vmem>>, %arg6: memref<2x32xf32, #tpu.memory_space<vmem>>) attributes {dimension_semantics = [#tpu.dimension_semantics<parallel>, #tpu.dimension_semantics<arbitrary>], iteration_bounds = array<i64: 1, 1>, scalar_prefetch = 0 : i64, scratch_operands = 1 : i64, tpu.core_type = #tpu.core_type<tc>, window_params = [{transform_indices = @transform_0, window_bounds = array<i64: 8, 2, 64>}, {transform_indices = @transform_1, window_bounds = array<i64: 2, 32>}, {pipeline_mode = #tpu.pipeline_mode<synchronous>, transform_indices = @transform_2, window_bounds = array<i64: 32, 64>}, {transform_indices = @transform_3, window_bounds = array<i64: 8, 2, 32>}]} {
    %c0_i32 = arith.constant 0 : i32
    %0 = arith.cmpi eq, %arg1, %c0_i32 : i32
    %1 = arith.extui %0 : i1 to i32
    %c0_i32_0 = arith.constant 0 : i32
    %2 = arith.cmpi ne, %1, %c0_i32_0 : i32
    scf.if %2 {
      %c0_92 = arith.constant 0 : index
      %c0_93 = arith.constant 0 : index
      %213 = vector.load %arg3[%c0_92, %c0_93] : memref<2x32xf32, #tpu.memory_space<vmem>>, vector<2x32xf32>
      %c0_94 = arith.constant 0 : index
      %c0_95 = arith.constant 0 : index
      %214 = vector.load %arg6[%c0_94, %c0_95] : memref<2x32xf32, #tpu.memory_space<vmem>>, vector<2x32xf32>
      tpu.vector_store %arg6[%c0_94, %c0_95], %213 {strides = array<i32>} : memref<2x32xf32, #tpu.memory_space<vmem>>, vector<2x32xf32>,
    } else {
    }
    %c0 = arith.constant 0 : index
    %c0_1 = arith.constant 0 : index
    %3 = vector.load %arg6[%c0, %c0_1] : memref<2x32xf32, #tpu.memory_space<vmem>>, vector<2x32xf32>
    %c0_i32_2 = arith.constant 0 : i32
    %4 = arith.index_cast %c0_i32_2 : i32 to index
    %c0_3 = arith.constant 0 : index
    %c0_4 = arith.constant 0 : index
    %5 = vector.load %arg2[%4, %c0_3, %c0_4] : memref<8x2x64xf32, #tpu.memory_space<vmem>>, vector<1x2x64xf32>
    %6 = vector.shape_cast %5 : vector<1x2x64xf32> to vector<2x64xf32>
    %7 = arith.truncf %3 : vector<2x32xf32> to vector<2x32xbf16>
    %c0_5 = arith.constant 0 : index
    %c0_6 = arith.constant 0 : index
    %8 = vector.load %arg4[%c0_5, %c0_6] : memref<32x64xbf16, #tpu.memory_space<vmem>>, vector<32x64xbf16>
    %cst = arith.constant dense<0.000000e+00> : vector<2x64xf32>
    %9 = tpu.matmul %7, %8, %cst {dimension_numbers = #tpu.dot_dimension_numbers<[1], [0], [0], [1], [0, 0, 1, 1], [], []>} : vector<2x32xbf16>, vector<32x64xbf16>, vector<2x64xf32> -> vector<2x64xf32>
    %10 = arith.addf %6, %9 : vector<2x64xf32>
    %11 = vector.extract_strided_slice %10 {offsets = [0, 0], sizes = [2, 32], strides = [1, 1]} : vector<2x64xf32> to vector<2x32xf32>
    %12 = math.tanh %11 : vector<2x32xf32>
    %13 = vector.extract_strided_slice %10 {offsets = [0, 32], sizes = [2, 32], strides = [1, 1]} : vector<2x64xf32> to vector<2x32xf32>
    %cst_7 = arith.constant 5.000000e-01 : f32
    %14 = vector.broadcast %cst_7 : f32 to vector<2x32xf32>
    %15 = arith.mulf %14, %13 : vector<2x32xf32>
    %16 = math.tanh %15 : vector<2x32xf32>
    %cst_8 = arith.constant 1.000000e+00 : f32
    %17 = vector.broadcast %cst_8 : f32 to vector<2x32xf32>
    %18 = arith.addf %17, %16 : vector<2x32xf32>
    %cst_9 = arith.constant 5.000000e-01 : f32
    %19 = vector.broadcast %cst_9 : f32 to vector<2x32xf32>
    %20 = arith.mulf %19, %18 : vector<2x32xf32>
    %21 = arith.mulf %20, %12 : vector<2x32xf32>
    %cst_10 = arith.constant 1.000000e+00 : f32
    %22 = vector.broadcast %cst_10 : f32 to vector<2x32xf32>
    %23 = arith.subf %22, %20 : vector<2x32xf32>
    %24 = arith.mulf %23, %3 : vector<2x32xf32>
    %25 = arith.addf %21, %24 : vector<2x32xf32>
    %26 = arith.index_cast %c0_i32_2 : i32 to index
    %c0_11 = arith.constant 0 : index
    %c0_12 = arith.constant 0 : index
    %27 = vector.load %arg5[%26, %c0_11, %c0_12] : memref<8x2x32xf32, #tpu.memory_space<vmem>>, vector<1x2x32xf32>
    %28 = vector.shape_cast %27 : vector<1x2x32xf32> to vector<2x32xf32>
    %29 = vector.shape_cast %25 : vector<2x32xf32> to vector<1x2x32xf32>
    tpu.vector_store %arg5[%26, %c0_11, %c0_12], %29 {strides = array<i32>} : memref<8x2x32xf32, #tpu.memory_space<vmem>>, vector<1x2x32xf32>,
    %c1_i32 = arith.constant 1 : i32
    %30 = arith.index_cast %c1_i32 : i32 to index
    %c0_13 = arith.constant 0 : index
    %c0_14 = arith.constant 0 : index
    %31 = vector.load %arg2[%30, %c0_13, %c0_14] : memref<8x2x64xf32, #tpu.memory_space<vmem>>, vector<1x2x64xf32>
    %32 = vector.shape_cast %31 : vector<1x2x64xf32> to vector<2x64xf32>
    %33 = arith.truncf %25 : vector<2x32xf32> to vector<2x32xbf16>
    %c0_15 = arith.constant 0 : index
    %c0_16 = arith.constant 0 : index
    %34 = vector.load %arg4[%c0_15, %c0_16] : memref<32x64xbf16, #tpu.memory_space<vmem>>, vector<32x64xbf16>
    %cst_17 = arith.constant dense<0.000000e+00> : vector<2x64xf32>
    %35 = tpu.matmul %33, %34, %cst_17 {dimension_numbers = #tpu.dot_dimension_numbers<[1], [0], [0], [1], [0, 0, 1, 1], [], []>} : vector<2x32xbf16>, vector<32x64xbf16>, vector<2x64xf32> -> vector<2x64xf32>
    %36 = arith.addf %32, %35 : vector<2x64xf32>
    %37 = vector.extract_strided_slice %36 {offsets = [0, 0], sizes = [2, 32], strides = [1, 1]} : vector<2x64xf32> to vector<2x32xf32>
    %38 = math.tanh %37 : vector<2x32xf32>
    %39 = vector.extract_strided_slice %36 {offsets = [0, 32], sizes = [2, 32], strides = [1, 1]} : vector<2x64xf32> to vector<2x32xf32>
    %cst_18 = arith.constant 5.000000e-01 : f32
    %40 = vector.broadcast %cst_18 : f32 to vector<2x32xf32>
    %41 = arith.mulf %40, %39 : vector<2x32xf32>
    %42 = math.tanh %41 : vector<2x32xf32>
    %cst_19 = arith.constant 1.000000e+00 : f32
    %43 = vector.broadcast %cst_19 : f32 to vector<2x32xf32>
    %44 = arith.addf %43, %42 : vector<2x32xf32>
    %cst_20 = arith.constant 5.000000e-01 : f32
    %45 = vector.broadcast %cst_20 : f32 to vector<2x32xf32>
    %46 = arith.mulf %45, %44 : vector<2x32xf32>
    %47 = arith.mulf %46, %38 : vector<2x32xf32>
    %cst_21 = arith.constant 1.000000e+00 : f32
    %48 = vector.broadcast %cst_21 : f32 to vector<2x32xf32>
    %49 = arith.subf %48, %46 : vector<2x32xf32>
    %50 = arith.mulf %49, %25 : vector<2x32xf32>
    %51 = arith.addf %47, %50 : vector<2x32xf32>
    %52 = arith.index_cast %c1_i32 : i32 to index
    %c0_22 = arith.constant 0 : index
    %c0_23 = arith.constant 0 : index
    %53 = vector.load %arg5[%52, %c0_22, %c0_23] : memref<8x2x32xf32, #tpu.memory_space<vmem>>, vector<1x2x32xf32>
    %54 = vector.shape_cast %53 : vector<1x2x32xf32> to vector<2x32xf32>
    %55 = vector.shape_cast %51 : vector<2x32xf32> to vector<1x2x32xf32>
    tpu.vector_store %arg5[%52, %c0_22, %c0_23], %55 {strides = array<i32>} : memref<8x2x32xf32, #tpu.memory_space<vmem>>, vector<1x2x32xf32>,
    %c2_i32 = arith.constant 2 : i32
    %56 = arith.index_cast %c2_i32 : i32 to index
    %c0_24 = arith.constant 0 : index
    %c0_25 = arith.constant 0 : index
    %57 = vector.load %arg2[%56, %c0_24, %c0_25] : memref<8x2x64xf32, #tpu.memory_space<vmem>>, vector<1x2x64xf32>
    %58 = vector.shape_cast %57 : vector<1x2x64xf32> to vector<2x64xf32>
    %59 = arith.truncf %51 : vector<2x32xf32> to vector<2x32xbf16>
    %c0_26 = arith.constant 0 : index
    %c0_27 = arith.constant 0 : index
    %60 = vector.load %arg4[%c0_26, %c0_27] : memref<32x64xbf16, #tpu.memory_space<vmem>>, vector<32x64xbf16>
    %cst_28 = arith.constant dense<0.000000e+00> : vector<2x64xf32>
    %61 = tpu.matmul %59, %60, %cst_28 {dimension_numbers = #tpu.dot_dimension_numbers<[1], [0], [0], [1], [0, 0, 1, 1], [], []>} : vector<2x32xbf16>, vector<32x64xbf16>, vector<2x64xf32> -> vector<2x64xf32>
    %62 = arith.addf %58, %61 : vector<2x64xf32>
    %63 = vector.extract_strided_slice %62 {offsets = [0, 0], sizes = [2, 32], strides = [1, 1]} : vector<2x64xf32> to vector<2x32xf32>
    %64 = math.tanh %63 : vector<2x32xf32>
    %65 = vector.extract_strided_slice %62 {offsets = [0, 32], sizes = [2, 32], strides = [1, 1]} : vector<2x64xf32> to vector<2x32xf32>
    %cst_29 = arith.constant 5.000000e-01 : f32
    %66 = vector.broadcast %cst_29 : f32 to vector<2x32xf32>
    %67 = arith.mulf %66, %65 : vector<2x32xf32>
    %68 = math.tanh %67 : vector<2x32xf32>
    %cst_30 = arith.constant 1.000000e+00 : f32
    %69 = vector.broadcast %cst_30 : f32 to vector<2x32xf32>
    %70 = arith.addf %69, %68 : vector<2x32xf32>
    %cst_31 = arith.constant 5.000000e-01 : f32
    %71 = vector.broadcast %cst_31 : f32 to vector<2x32xf32>
    %72 = arith.mulf %71, %70 : vector<2x32xf32>
    %73 = arith.mulf %72, %64 : vector<2x32xf32>
    %cst_32 = arith.constant 1.000000e+00 : f32
    %74 = vector.broadcast %cst_32 : f32 to vector<2x32xf32>
    %75 = arith.subf %74, %72 : vector<2x32xf32>
    %76 = arith.mulf %75, %51 : vector<2x32xf32>
    %77 = arith.addf %73, %76 : vector<2x32xf32>
    %78 = arith.index_cast %c2_i32 : i32 to index
    %c0_33 = arith.constant 0 : index
    %c0_34 = arith.constant 0 : index
    %79 = vector.load %arg5[%78, %c0_33, %c0_34] : memref<8x2x32xf32, #tpu.memory_space<vmem>>, vector<1x2x32xf32>
    %80 = vector.shape_cast %79 : vector<1x2x32xf32> to vector<2x32xf32>
    %81 = vector.shape_cast %77 : vector<2x32xf32> to vector<1x2x32xf32>
    tpu.vector_store %arg5[%78, %c0_33, %c0_34], %81 {strides = array<i32>} : memref<8x2x32xf32, #tpu.memory_space<vmem>>, vector<1x2x32xf32>,
    %c3_i32 = arith.constant 3 : i32
    %82 = arith.index_cast %c3_i32 : i32 to index
    %c0_35 = arith.constant 0 : index
    %c0_36 = arith.constant 0 : index
    %83 = vector.load %arg2[%82, %c0_35, %c0_36] : memref<8x2x64xf32, #tpu.memory_space<vmem>>, vector<1x2x64xf32>
    %84 = vector.shape_cast %83 : vector<1x2x64xf32> to vector<2x64xf32>
    %85 = arith.truncf %77 : vector<2x32xf32> to vector<2x32xbf16>
    %c0_37 = arith.constant 0 : index
    %c0_38 = arith.constant 0 : index
    %86 = vector.load %arg4[%c0_37, %c0_38] : memref<32x64xbf16, #tpu.memory_space<vmem>>, vector<32x64xbf16>
    %cst_39 = arith.constant dense<0.000000e+00> : vector<2x64xf32>
    %87 = tpu.matmul %85, %86, %cst_39 {dimension_numbers = #tpu.dot_dimension_numbers<[1], [0], [0], [1], [0, 0, 1, 1], [], []>} : vector<2x32xbf16>, vector<32x64xbf16>, vector<2x64xf32> -> vector<2x64xf32>
    %88 = arith.addf %84, %87 : vector<2x64xf32>
    %89 = vector.extract_strided_slice %88 {offsets = [0, 0], sizes = [2, 32], strides = [1, 1]} : vector<2x64xf32> to vector<2x32xf32>
    %90 = math.tanh %89 : vector<2x32xf32>
    %91 = vector.extract_strided_slice %88 {offsets = [0, 32], sizes = [2, 32], strides = [1, 1]} : vector<2x64xf32> to vector<2x32xf32>
    %cst_40 = arith.constant 5.000000e-01 : f32
    %92 = vector.broadcast %cst_40 : f32 to vector<2x32xf32>
    %93 = arith.mulf %92, %91 : vector<2x32xf32>
    %94 = math.tanh %93 : vector<2x32xf32>
    %cst_41 = arith.constant 1.000000e+00 : f32
    %95 = vector.broadcast %cst_41 : f32 to vector<2x32xf32>
    %96 = arith.addf %95, %94 : vector<2x32xf32>
    %cst_42 = arith.constant 5.000000e-01 : f32
    %97 = vector.broadcast %cst_42 : f32 to vector<2x32xf32>
    %98 = arith.mulf %97, %96 : vector<2x32xf32>
    %99 = arith.mulf %98, %90 : vector<2x32xf32>
    %cst_43 = arith.constant 1.000000e+00 : f32
    %100 = vector.broadcast %cst_43 : f32 to vector<2x32xf32>
    %101 = arith.subf %100, %98 : vector<2x32xf32>
    %102 = arith.mulf %101, %77 : vector<2x32xf32>
    %103 = arith.addf %99, %102 : vector<2x32xf32>
    %104 = arith.index_cast %c3_i32 : i32 to index
    %c0_44 = arith.constant 0 : index
    %c0_45 = arith.constant 0 : index
    %105 = vector.load %arg5[%104, %c0_44, %c0_45] : memref<8x2x32xf32, #tpu.memory_space<vmem>>, vector<1x2x32xf32>
    %106 = vector.shape_cast %105 : vector<1x2x32xf32> to vector<2x32xf32>
    %107 = vector.shape_cast %103 : vector<2x32xf32> to vector<1x2x32xf32>
    tpu.vector_store %arg5[%104, %c0_44, %c0_45], %107 {strides = array<i32>} : memref<8x2x32xf32, #tpu.memory_space<vmem>>, vector<1x2x32xf32>,
    %c4_i32 = arith.constant 4 : i32
    %108 = arith.index_cast %c4_i32 : i32 to index
    %c0_46 = arith.constant 0 : index
    %c0_47 = arith.constant 0 : index
    %109 = vector.load %arg2[%108, %c0_46, %c0_47] : memref<8x2x64xf32, #tpu.memory_space<vmem>>, vector<1x2x64xf32>
    %110 = vector.shape_cast %109 : vector<1x2x64xf32> to vector<2x64xf32>
    %111 = arith.truncf %103 : vector<2x32xf32> to vector<2x32xbf16>
    %c0_48 = arith.constant 0 : index
    %c0_49 = arith.constant 0 : index
    %112 = vector.load %arg4[%c0_48, %c0_49] : memref<32x64xbf16, #tpu.memory_space<vmem>>, vector<32x64xbf16>
    %cst_50 = arith.constant dense<0.000000e+00> : vector<2x64xf32>
    %113 = tpu.matmul %111, %112, %cst_50 {dimension_numbers = #tpu.dot_dimension_numbers<[1], [0], [0], [1], [0, 0, 1, 1], [], []>} : vector<2x32xbf16>, vector<32x64xbf16>, vector<2x64xf32> -> vector<2x64xf32>
    %114 = arith.addf %110, %113 : vector<2x64xf32>
    %115 = vector.extract_strided_slice %114 {offsets = [0, 0], sizes = [2, 32], strides = [1, 1]} : vector<2x64xf32> to vector<2x32xf32>
    %116 = math.tanh %115 : vector<2x32xf32>
    %117 = vector.extract_strided_slice %114 {offsets = [0, 32], sizes = [2, 32], strides = [1, 1]} : vector<2x64xf32> to vector<2x32xf32>
    %cst_51 = arith.constant 5.000000e-01 : f32
    %118 = vector.broadcast %cst_51 : f32 to vector<2x32xf32>
    %119 = arith.mulf %118, %117 : vector<2x32xf32>
    %120 = math.tanh %119 : vector<2x32xf32>
    %cst_52 = arith.constant 1.000000e+00 : f32
    %121 = vector.broadcast %cst_52 : f32 to vector<2x32xf32>
    %122 = arith.addf %121, %120 : vector<2x32xf32>
    %cst_53 = arith.constant 5.000000e-01 : f32
    %123 = vector.broadcast %cst_53 : f32 to vector<2x32xf32>
    %124 = arith.mulf %123, %122 : vector<2x32xf32>
    %125 = arith.mulf %124, %116 : vector<2x32xf32>
    %cst_54 = arith.constant 1.000000e+00 : f32
    %126 = vector.broadcast %cst_54 : f32 to vector<2x32xf32>
    %127 = arith.subf %126, %124 : vector<2x32xf32>
    %128 = arith.mulf %127, %103 : vector<2x32xf32>
    %129 = arith.addf %125, %128 : vector<2x32xf32>
    %130 = arith.index_cast %c4_i32 : i32 to index
    %c0_55 = arith.constant 0 : index
    %c0_56 = arith.constant 0 : index
    %131 = vector.load %arg5[%130, %c0_55, %c0_56] : memref<8x2x32xf32, #tpu.memory_space<vmem>>, vector<1x2x32xf32>
    %132 = vector.shape_cast %131 : vector<1x2x32xf32> to vector<2x32xf32>
    %133 = vector.shape_cast %129 : vector<2x32xf32> to vector<1x2x32xf32>
    tpu.vector_store %arg5[%130, %c0_55, %c0_56], %133 {strides = array<i32>} : memref<8x2x32xf32, #tpu.memory_space<vmem>>, vector<1x2x32xf32>,
    %c5_i32 = arith.constant 5 : i32
    %134 = arith.index_cast %c5_i32 : i32 to index
    %c0_57 = arith.constant 0 : index
    %c0_58 = arith.constant 0 : index
    %135 = vector.load %arg2[%134, %c0_57, %c0_58] : memref<8x2x64xf32, #tpu.memory_space<vmem>>, vector<1x2x64xf32>
    %136 = vector.shape_cast %135 : vector<1x2x64xf32> to vector<2x64xf32>
    %137 = arith.truncf %129 : vector<2x32xf32> to vector<2x32xbf16>
    %c0_59 = arith.constant 0 : index
    %c0_60 = arith.constant 0 : index
    %138 = vector.load %arg4[%c0_59, %c0_60] : memref<32x64xbf16, #tpu.memory_space<vmem>>, vector<32x64xbf16>
    %cst_61 = arith.constant dense<0.000000e+00> : vector<2x64xf32>
    %139 = tpu.matmul %137, %138, %cst_61 {dimension_numbers = #tpu.dot_dimension_numbers<[1], [0], [0], [1], [0, 0, 1, 1], [], []>} : vector<2x32xbf16>, vector<32x64xbf16>, vector<2x64xf32> -> vector<2x64xf32>
    %140 = arith.addf %136, %139 : vector<2x64xf32>
    %141 = vector.extract_strided_slice %140 {offsets = [0, 0], sizes = [2, 32], strides = [1, 1]} : vector<2x64xf32> to vector<2x32xf32>
    %142 = math.tanh %141 : vector<2x32xf32>
    %143 = vector.extract_strided_slice %140 {offsets = [0, 32], sizes = [2, 32], strides = [1, 1]} : vector<2x64xf32> to vector<2x32xf32>
    %cst_62 = arith.constant 5.000000e-01 : f32
    %144 = vector.broadcast %cst_62 : f32 to vector<2x32xf32>
    %145 = arith.mulf %144, %143 : vector<2x32xf32>
    %146 = math.tanh %145 : vector<2x32xf32>
    %cst_63 = arith.constant 1.000000e+00 : f32
    %147 = vector.broadcast %cst_63 : f32 to vector<2x32xf32>
    %148 = arith.addf %147, %146 : vector<2x32xf32>
    %cst_64 = arith.constant 5.000000e-01 : f32
    %149 = vector.broadcast %cst_64 : f32 to vector<2x32xf32>
    %150 = arith.mulf %149, %148 : vector<2x32xf32>
    %151 = arith.mulf %150, %142 : vector<2x32xf32>
    %cst_65 = arith.constant 1.000000e+00 : f32
    %152 = vector.broadcast %cst_65 : f32 to vector<2x32xf32>
    %153 = arith.subf %152, %150 : vector<2x32xf32>
    %154 = arith.mulf %153, %129 : vector<2x32xf32>
    %155 = arith.addf %151, %154 : vector<2x32xf32>
    %156 = arith.index_cast %c5_i32 : i32 to index
    %c0_66 = arith.constant 0 : index
    %c0_67 = arith.constant 0 : index
    %157 = vector.load %arg5[%156, %c0_66, %c0_67] : memref<8x2x32xf32, #tpu.memory_space<vmem>>, vector<1x2x32xf32>
    %158 = vector.shape_cast %157 : vector<1x2x32xf32> to vector<2x32xf32>
    %159 = vector.shape_cast %155 : vector<2x32xf32> to vector<1x2x32xf32>
    tpu.vector_store %arg5[%156, %c0_66, %c0_67], %159 {strides = array<i32>} : memref<8x2x32xf32, #tpu.memory_space<vmem>>, vector<1x2x32xf32>,
    %c6_i32 = arith.constant 6 : i32
    %160 = arith.index_cast %c6_i32 : i32 to index
    %c0_68 = arith.constant 0 : index
    %c0_69 = arith.constant 0 : index
    %161 = vector.load %arg2[%160, %c0_68, %c0_69] : memref<8x2x64xf32, #tpu.memory_space<vmem>>, vector<1x2x64xf32>
    %162 = vector.shape_cast %161 : vector<1x2x64xf32> to vector<2x64xf32>
    %163 = arith.truncf %155 : vector<2x32xf32> to vector<2x32xbf16>
    %c0_70 = arith.constant 0 : index
    %c0_71 = arith.constant 0 : index
    %164 = vector.load %arg4[%c0_70, %c0_71] : memref<32x64xbf16, #tpu.memory_space<vmem>>, vector<32x64xbf16>
    %cst_72 = arith.constant dense<0.000000e+00> : vector<2x64xf32>
    %165 = tpu.matmul %163, %164, %cst_72 {dimension_numbers = #tpu.dot_dimension_numbers<[1], [0], [0], [1], [0, 0, 1, 1], [], []>} : vector<2x32xbf16>, vector<32x64xbf16>, vector<2x64xf32> -> vector<2x64xf32>
    %166 = arith.addf %162, %165 : vector<2x64xf32>
    %167 = vector.extract_strided_slice %166 {offsets = [0, 0], sizes = [2, 32], strides = [1, 1]} : vector<2x64xf32> to vector<2x32xf32>
    %168 = math.tanh %167 : vector<2x32xf32>
    %169 = vector.extract_strided_slice %166 {offsets = [0, 32], sizes = [2, 32], strides = [1, 1]} : vector<2x64xf32> to vector<2x32xf32>
    %cst_73 = arith.constant 5.000000e-01 : f32
    %170 = vector.broadcast %cst_73 : f32 to vector<2x32xf32>
    %171 = arith.mulf %170, %169 : vector<2x32xf32>
    %172 = math.tanh %171 : vector<2x32xf32>
    %cst_74 = arith.constant 1.000000e+00 : f32
    %173 = vector.broadcast %cst_74 : f32 to vector<2x32xf32>
    %174 = arith.addf %173, %172 : vector<2x32xf32>
    %cst_75 = arith.constant 5.000000e-01 : f32
    %175 = vector.broadcast %cst_75 : f32 to vector<2x32xf32>
    %176 = arith.mulf %175, %174 : vector<2x32xf32>
    %177 = arith.mulf %176, %168 : vector<2x32xf32>
    %cst_76 = arith.constant 1.000000e+00 : f32
    %178 = vector.broadcast %cst_76 : f32 to vector<2x32xf32>
    %179 = arith.subf %178, %176 : vector<2x32xf32>
    %180 = arith.mulf %179, %155 : vector<2x32xf32>
    %181 = arith.addf %177, %180 : vector<2x32xf32>
    %182 = arith.index_cast %c6_i32 : i32 to index
    %c0_77 = arith.constant 0 : index
    %c0_78 = arith.constant 0 : index
    %183 = vector.load %arg5[%182, %c0_77, %c0_78] : memref<8x2x32xf32, #tpu.memory_space<vmem>>, vector<1x2x32xf32>
    %184 = vector.shape_cast %183 : vector<1x2x32xf32> to vector<2x32xf32>
    %185 = vector.shape_cast %181 : vector<2x32xf32> to vector<1x2x32xf32>
    tpu.vector_store %arg5[%182, %c0_77, %c0_78], %185 {strides = array<i32>} : memref<8x2x32xf32, #tpu.memory_space<vmem>>, vector<1x2x32xf32>,
    %c7_i32 = arith.constant 7 : i32
    %186 = arith.index_cast %c7_i32 : i32 to index
    %c0_79 = arith.constant 0 : index
    %c0_80 = arith.constant 0 : index
    %187 = vector.load %arg2[%186, %c0_79, %c0_80] : memref<8x2x64xf32, #tpu.memory_space<vmem>>, vector<1x2x64xf32>
    %188 = vector.shape_cast %187 : vector<1x2x64xf32> to vector<2x64xf32>
    %189 = arith.truncf %181 : vector<2x32xf32> to vector<2x32xbf16>
    %c0_81 = arith.constant 0 : index
    %c0_82 = arith.constant 0 : index
    %190 = vector.load %arg4[%c0_81, %c0_82] : memref<32x64xbf16, #tpu.memory_space<vmem>>, vector<32x64xbf16>
    %cst_83 = arith.constant dense<0.000000e+00> : vector<2x64xf32>
    %191 = tpu.matmul %189, %190, %cst_83 {dimension_numbers = #tpu.dot_dimension_numbers<[1], [0], [0], [1], [0, 0, 1, 1], [], []>} : vector<2x32xbf16>, vector<32x64xbf16>, vector<2x64xf32> -> vector<2x64xf32>
    %192 = arith.addf %188, %191 : vector<2x64xf32>
    %193 = vector.extract_strided_slice %192 {offsets = [0, 0], sizes = [2, 32], strides = [1, 1]} : vector<2x64xf32> to vector<2x32xf32>
    %194 = math.tanh %193 : vector<2x32xf32>
    %195 = vector.extract_strided_slice %192 {offsets = [0, 32], sizes = [2, 32], strides = [1, 1]} : vector<2x64xf32> to vector<2x32xf32>
    %cst_84 = arith.constant 5.000000e-01 : f32
    %196 = vector.broadcast %cst_84 : f32 to vector<2x32xf32>
    %197 = arith.mulf %196, %195 : vector<2x32xf32>
    %198 = math.tanh %197 : vector<2x32xf32>
    %cst_85 = arith.constant 1.000000e+00 : f32
    %199 = vector.broadcast %cst_85 : f32 to vector<2x32xf32>
    %200 = arith.addf %199, %198 : vector<2x32xf32>
    %cst_86 = arith.constant 5.000000e-01 : f32
    %201 = vector.broadcast %cst_86 : f32 to vector<2x32xf32>
    %202 = arith.mulf %201, %200 : vector<2x32xf32>
    %203 = arith.mulf %202, %194 : vector<2x32xf32>
    %cst_87 = arith.constant 1.000000e+00 : f32
    %204 = vector.broadcast %cst_87 : f32 to vector<2x32xf32>
    %205 = arith.subf %204, %202 : vector<2x32xf32>
    %206 = arith.mulf %205, %181 : vector<2x32xf32>
    %207 = arith.addf %203, %206 : vector<2x32xf32>
    %208 = arith.index_cast %c7_i32 : i32 to index
    %c0_88 = arith.constant 0 : index
    %c0_89 = arith.constant 0 : index
    %209 = vector.load %arg5[%208, %c0_88, %c0_89] : memref<8x2x32xf32, #tpu.memory_space<vmem>>, vector<1x2x32xf32>
    %210 = vector.shape_cast %209 : vector<1x2x32xf32> to vector<2x32xf32>
    %211 = vector.shape_cast %207 : vector<2x32xf32> to vector<1x2x32xf32>
    tpu.vector_store %arg5[%208, %c0_88, %c0_89], %211 {strides = array<i32>} : memref<8x2x32xf32, #tpu.memory_space<vmem>>, vector<1x2x32xf32>,
    %c8_i32 = arith.constant 8 : i32
    %c0_90 = arith.constant 0 : index
    %c0_91 = arith.constant 0 : index
    %212 = vector.load %arg6[%c0_90, %c0_91] : memref<2x32xf32, #tpu.memory_space<vmem>>, vector<2x32xf32>
    tpu.vector_store %arg6[%c0_90, %c0_91], %207 {strides = array<i32>} : memref<2x32xf32, #tpu.memory_space<vmem>>, vector<2x32xf32>,
    return
  }
  func.func @transform_0(%arg0: i32, %arg1: i32) -> (i32, i32, i32) {
    %c0_i32 = arith.constant 0 : i32
    %c0_i32_0 = arith.constant 0 : i32
    return %arg1, %arg0, %c0_i32 : i32, i32, i32
  }
  func.func @transform_1(%arg0: i32, %arg1: i32) -> (i32, i32) {
    %c0_i32 = arith.constant 0 : i32
    %c0_i32_0 = arith.constant 0 : i32
    return %arg0, %c0_i32 : i32, i32
  }
  func.func @transform_2(%arg0: i32, %arg1: i32) -> (i32, i32) {
    %c0_i32 = arith.constant 0 : i32
    %c0_i32_0 = arith.constant 0 : i32
    %c0_i32_1 = arith.constant 0 : i32
    return %c0_i32, %c0_i32_0 : i32, i32
  }
  func.func @transform_3(%arg0: i32, %arg1: i32) -> (i32, i32, i32) {
    %c0_i32 = arith.constant 0 : i32
    %c0_i32_0 = arith.constant 0 : i32
    return %arg1, %arg0, %c0_i32 : i32, i32, i32
  }
}

</mosaic_0001>

<llo_original>
// kernel: tpu_custom_call.1
$region0: #{tpu_custom_call.1}
  #allocation0 [shape = 'u32[]', space=smem, size = 0x4, offset = 0x4, fixed_abs, tag = 'smem constant byte address 0x4 - core index']
  #allocation1 [shape = 'u32[72,128]{1,0:T(1,128)}', space=vmem, size = 0x9000, scoped, tag = 'internal scratch']
  #allocation2 [shape = 'f32[2,32]{1,0:T(2,128)}', space=vmem, size = 0x400, scoped, tag = 'scratch operand']
  %s0 = inlined_call_operand.hbm [shape: f32[8,2,64], index: 0, kind: input, shape index: {}]
  %s1 = inlined_call_operand.hbm [shape: f32[2,32], index: 1, kind: input, shape index: {}]
  %s2 = inlined_call_operand.hbm [shape: bf16[32,64], index: 2, kind: input, shape index: {}]
  %s3 = inlined_call_operand.hbm [shape: f32[8,2,32], index: 3, kind: output, shape index: {}]
  %s4 = sld [smem:[#allocation0]]
  $region38: #{tpu_custom_call.1} parent=0
    _
  %s6 = ssub.s32 1, %s4
  %s7 = scalar_select 0, %s6, %s4
  $region1: #{tpu_custom_call.1} parent=0
    #allocation3 [shape = 'u8[8192]{0}', space=vmem, size = 0x2000, scoped, tag = 'input window, operand 0, single buffered']
    #allocation4 [shape = 's32[1]{0}', space=sflag, size = 0x4, scoped, tag = 'scoped memory for tpu_custom_call.1']
    #allocation5 [shape = 's32[1]{0}', space=sflag, size = 0x4, scoped, tag = 'scoped memory for tpu_custom_call.1']
    #allocation6 [shape = 'u8[1024]{0}', space=vmem, size = 0x400, scoped, tag = 'input window, operand 1, single buffered']
    #allocation7 [shape = 's32[1]{0}', space=sflag, size = 0x4, scoped, tag = 'scoped memory for tpu_custom_call.1']
    #allocation8 [shape = 'u8[8192]{0}', space=vmem, size = 0x2000, scoped, tag = 'input window, operand 2, single buffered']
    #allocation9 [shape = 'u8[8192]{0}', space=vmem, size = 0x2000, scoped, tag = 'output window, operand 0, single buffered']
    %8 = vsyncpa [#allocation4], 0
    %9 = vsyncpa [#allocation7], 0
    %10 = vsyncpa [#allocation5], 0
    // Predicated region
    $region2: #{tpu_custom_call.1} parent=1 // pred_check
      _
    $region3: #{tpu_custom_call.1} parent=1 // pred_check_branch
      %12 = sbr.rel (0) target = $region5
    $region4: #{tpu_custom_call.1} parent=1 // pred_region
      %14 = vsyncadd [#allocation4], 0
      %s15 = sshll.u32 %s0, 4
      %s16 = int_to_ptr.hbm [resolvable:$true] %s15
      %s17 = sshll.u32 [#allocation3], 4
      %s18 = int_to_ptr.vmem [resolvable:$true] %s17
      %23 = dma.hbm_to_vmem [thread:$0]  %s16, 256, %s18, [#allocation4], 32, 32, 2
    $region5: #{tpu_custom_call.1} parent=1 // pred_fallthru
      _
    // Predicated region
    $region6: #{tpu_custom_call.1} parent=1 // pred_check
      _
    $region7: #{tpu_custom_call.1} parent=1 // pred_check_branch
      %25 = sbr.rel (0) target = $region9
    $region8: #{tpu_custom_call.1} parent=1 // pred_region
      %27 = vsyncadd [#allocation7], 0
      %s29 = sshll.u32 %s1, 4
      %s30 = int_to_ptr.hbm [resolvable:$true] %s29
      %s31 = sshll.u32 [#allocation6], 4
      %s32 = int_to_ptr.vmem [resolvable:$true] %s31
      %34 = dma.hbm_to_vmem [thread:$0]  %s30, 32, %s32, [#allocation7]
    $region9: #{tpu_custom_call.1} parent=1 // pred_fallthru
      _
    // Predicated region
    $region10: #{tpu_custom_call.1} parent=1 // pred_check
      _
    $region11: #{tpu_custom_call.1} parent=1 // pred_check_branch
      %36 = sbr.rel (0) target = $region13
    $region12: #{tpu_custom_call.1} parent=1 // pred_region
      %38 = vsyncadd [#allocation7], 0
      %s39 = sshll.u32 %s2, 4
      %s40 = int_to_ptr.hbm [resolvable:$true] %s39
      %s41 = sshll.u32 [#allocation8], 4
      %s42 = int_to_ptr.vmem [resolvable:$true] %s41
      %47 = dma.hbm_to_vmem [thread:$0]  %s40, 256, %s42, [#allocation7], 64, 64, 4
    $region13: #{tpu_custom_call.1} parent=1 // pred_fallthru
      _
    // Predicated region
    $region14: #{tpu_custom_call.1} parent=1 // pred_check
      _
    $region15: #{tpu_custom_call.1} parent=1 // pred_check_branch
      %49 = sbr.rel (0) target = $region17
    $region16: #{tpu_custom_call.1} parent=1 // pred_region
      %51 = dma.done [#allocation4], 256
    $region17: #{tpu_custom_call.1} parent=1 // pred_fallthru
      _
    // Predicated region
    $region18: #{tpu_custom_call.1} parent=1 // pred_check
      _
    $region19: #{tpu_custom_call.1} parent=1 // pred_check_branch
      %53 = sbr.rel (0) target = $region21
    $region20: #{tpu_custom_call.1} parent=1 // pred_region
      %55 = dma.done [#allocation7], 32
    $region21: #{tpu_custom_call.1} parent=1 // pred_fallthru
      _
    // Predicated region
    $region22: #{tpu_custom_call.1} parent=1 // pred_check
      _
    $region23: #{tpu_custom_call.1} parent=1 // pred_check_branch
      %57 = sbr.rel (0) target = $region25
    $region24: #{tpu_custom_call.1} parent=1 // pred_region
      %59 = dma.done [#allocation7], 256
    $region25: #{tpu_custom_call.1} parent=1 // pred_fallthru
      _
    %p61 = scmp.eq.s32.totalorder 0, 0
    // Predicated region
    $region26: #{tpu_custom_call.1} parent=1 // pred_check
      %p62 = pneg %p61
    $region27: #{tpu_custom_call.1} parent=1 // pred_check_branch
      %64 = sbr.rel (%p62) target = $region29
    $region28: #{tpu_custom_call.1} parent=1 // pred_region
      %v65 = vld [vmem:[#allocation6] sm:$0x3]
      %vm66 = vcmask 254976
      %67 = vst.msk [vmem:[#allocation2] sm:$0x3] %vm66, %v65
    $region29: #{tpu_custom_call.1} parent=1 // pred_fallthru
      _
    %v68 = vld [vmem:[#allocation2] sm:$0x3]
    %v69 = vld [vmem:[#allocation3] sm:$0x3]
    %v70 = vpack.c.bf16 %v68, %v68
    %v71 = vld [vmem:[#allocation8] sm:$0xf]
    %v72 = vld [vmem:[#allocation8 + $0x4] sm:$0xf]
    %v73 = vld [vmem:[#allocation8 + $0x8] sm:$0xf]
    %v74 = vld [vmem:[#allocation8 + $0xc] sm:$0xf]
    %v79 = vunpack.c.l.b16 %v71
    %v80 = vunpack.c.l.b16 %v72
    %v81 = vunpack.c.l.b16 %v73
    %v82 = vunpack.c.l.b16 %v74
    %v83 = vpack.c.b16 %v80, %v79
    %v84 = vpack.c.b16 %v82, %v81
    %vm87 = vcmask 261120
    %v89 = vsel %vm87, %v70, 0
    %91 = vmatpush.bf16.msra.mxu0 0
    %92 = vmatpush.bf16.msra.mxu0 0
    %93 = vmatpush.bf16.msra.mxu0 0
    %94 = vmatpush.bf16.msra.mxu0 0
    %95 = vmatpush.bf16.msra.mxu0 0
    %96 = vmatpush.bf16.msra.mxu0 0
    %97 = vmatpush.bf16.msra.mxu0 %v84
    %98 = vmatpush.bf16.msra.mxu0 %v83
    %99 = vmatmul.bf16.gmra.mxu0 %v89
    %v100 = vpop.f32.mrf.mxu0
    %v101 = vadd.f32 0.0, %v100
    %v102 = vpop.f32.mrf.mxu0
    %103 = vdwg.mxu0
    %v104 = vadd.f32 %v69, %v101
    %v105 = vtanh.pop %v104
    %v106 = vmul.f32 %v104, 0.5
    %v107 = vtanh.pop %v106
    %v108 = vadd.f32 %v107, 1.0
    %v109 = vmul.f32 %v108, 0.5
    %111 = vrot.lane.b32.xlu0 %v105, 32
    %v112 = vpop.permute.xlu0 %111
    %v114 = vmul.f32 %v109, %v112
    %v115 = vsub.f32 1.0, %v109
    %117 = vrot.lane.b32.xlu0 %v68, 32
    %v118 = vpop.permute.xlu0 %117
    %v120 = vmul.f32 %v115, %v118
    %v121 = vadd.f32 %v114, %v120
    %123 = vrot.lane.b32.xlu0 %v121, 96
    %v124 = vpop.permute.xlu0 %123
    %vm126 = vcmask 254976
    %127 = vst.msk [vmem:[#allocation9] sm:$0x3] %vm126, %v124
    %s128 = scalar_lea.vmem [#allocation3], 2
    %v129 = vld [vmem:[%s128] sm:$0x3]
    %v130 = vpack.c.bf16 %v121, %v121
    %v131 = vld [vmem:[#allocation8] sm:$0xf]
    %v132 = vld [vmem:[#allocation8 + $0x4] sm:$0xf]
    %v133 = vld [vmem:[#allocation8 + $0x8] sm:$0xf]
    %v134 = vld [vmem:[#allocation8 + $0xc] sm:$0xf]
    %136 = vrot.lane.b32.xlu0 %v130, 96
    %v137 = vpop.permute.xlu0 %136
    %v142 = vunpack.c.l.b16 %v131
    %v143 = vunpack.c.l.b16 %v132
    %v144 = vunpack.c.l.b16 %v133
    %v145 = vunpack.c.l.b16 %v134
    %v146 = vpack.c.b16 %v143, %v142
    %v147 = vpack.c.b16 %v145, %v144
    %v151 = vsel %vm87, %v137, 0
    %153 = vmatpush.bf16.msra.mxu0 0
    %154 = vmatpush.bf16.msra.mxu0 0
    %155 = vmatpush.bf16.msra.mxu0 0
    %156 = vmatpush.bf16.msra.mxu0 0
    %157 = vmatpush.bf16.msra.mxu0 0
    %158 = vmatpush.bf16.msra.mxu0 0
    %159 = vmatpush.bf16.msra.mxu0 %v147
    %160 = vmatpush.bf16.msra.mxu0 %v146
    %161 = vmatmul.bf16.gmra.mxu0 %v151
    %v162 = vpop.f32.mrf.mxu0
    %v163 = vadd.f32 0.0, %v162
    %v164 = vpop.f32.mrf.mxu0
    %165 = vdwg.mxu0
    %v166 = vadd.f32 %v129, %v163
    %v167 = vtanh.pop %v166
    %v168 = vmul.f32 %v166, 0.5
    %v169 = vtanh.pop %v168
    %v170 = vadd.f32 %v169, 1.0
    %v171 = vmul.f32 %v170, 0.5
    %173 = vrot.lane.b32.xlu0 %v167, 32
    %v174 = vpop.permute.xlu0 %173
    %v176 = vmul.f32 %v171, %v174
    %v177 = vsub.f32 1.0, %v171
    %v178 = vmul.f32 %v177, %v121
    %v179 = vadd.f32 %v176, %v178
    %181 = vrot.lane.b32.xlu0 %v179, 96
    %v182 = vpop.permute.xlu0 %181
    %s184 = scalar_lea.vmem [#allocation9], 2
    %185 = vst.msk [vmem:[%s184] sm:$0x3] %vm126, %v182
    %s186 = scalar_lea.vmem [#allocation3], 4
    %v187 = vld [vmem:[%s186] sm:$0x3]
    %v188 = vpack.c.bf16 %v179, %v179
    %v189 = vld [vmem:[#allocation8] sm:$0xf]
    %v190 = vld [vmem:[#allocation8 + $0x4] sm:$0xf]
    %v191 = vld [vmem:[#allocation8 + $0x8] sm:$0xf]
    %v192 = vld [vmem:[#allocation8 + $0xc] sm:$0xf]
    %194 = vrot.lane.b32.xlu0 %v188, 96
    %v195 = vpop.permute.xlu0 %194
    %v200 = vunpack.c.l.b16 %v189
    %v201 = vunpack.c.l.b16 %v190
    %v202 = vunpack.c.l.b16 %v191
    %v203 = vunpack.c.l.b16 %v192
    %v204 = vpack.c.b16 %v201, %v200
    %v205 = vpack.c.b16 %v203, %v202
    %v209 = vsel %vm87, %v195, 0
    %211 = vmatpush.bf16.msra.mxu0 0
    %212 = vmatpush.bf16.msra.mxu0 0
    %213 = vmatpush.bf16.msra.mxu0 0
    %214 = vmatpush.bf16.msra.mxu0 0
    %215 = vmatpush.bf16.msra.mxu0 0
    %216 = vmatpush.bf16.msra.mxu0 0
    %217 = vmatpush.bf16.msra.mxu0 %v205
    %218 = vmatpush.bf16.msra.mxu0 %v204
    %219 = vmatmul.bf16.gmra.mxu0 %v209
    %v220 = vpop.f32.mrf.mxu0
    %v221 = vadd.f32 0.0, %v220
    %v222 = vpop.f32.mrf.mxu0
    %223 = vdwg.mxu0
    %v224 = vadd.f32 %v187, %v221
    %v225 = vtanh.pop %v224
    %v226 = vmul.f32 %v224, 0.5
    %v227 = vtanh.pop %v226
    %v228 = vadd.f32 %v227, 1.0
    %v229 = vmul.f32 %v228, 0.5
    %231 = vrot.lane.b32.xlu0 %v225, 32
    %v232 = vpop.permute.xlu0 %231
    %v234 = vmul.f32 %v229, %v232
    %v235 = vsub.f32 1.0, %v229
    %v236 = vmul.f32 %v235, %v179
    %v237 = vadd.f32 %v234, %v236
    %239 = vrot.lane.b32.xlu0 %v237, 96
    %v240 = vpop.permute.xlu0 %239
    %s242 = scalar_lea.vmem [#allocation9], 4
    %243 = vst.msk [vmem:[%s242] sm:$0x3] %vm126, %v240
    %s244 = scalar_lea.vmem [#allocation3], 6
    %v245 = vld [vmem:[%s244] sm:$0x3]
    %v246 = vpack.c.bf16 %v237, %v237
    %v247 = vld [vmem:[#allocation8] sm:$0xf]
    %v248 = vld [vmem:[#allocation8 + $0x4] sm:$0xf]
    %v249 = vld [vmem:[#allocation8 + $0x8] sm:$0xf]
    %v250 = vld [vmem:[#allocation8 + $0xc] sm:$0xf]
    %252 = vrot.lane.b32.xlu0 %v246, 96
    %v253 = vpop.permute.xlu0 %252
    %v258 = vunpack.c.l.b16 %v247
    %v259 = vunpack.c.l.b16 %v248
    %v260 = vunpack.c.l.b16 %v249
    %v261 = vunpack.c.l.b16 %v250
    %v262 = vpack.c.b16 %v259, %v258
    %v263 = vpack.c.b16 %v261, %v260
    %v267 = vsel %vm87, %v253, 0
    %269 = vmatpush.bf16.msra.mxu0 0
    %270 = vmatpush.bf16.msra.mxu0 0
    %271 = vmatpush.bf16.msra.mxu0 0
    %272 = vmatpush.bf16.msra.mxu0 0
    %273 = vmatpush.bf16.msra.mxu0 0
    %274 = vmatpush.bf16.msra.mxu0 0
    %275 = vmatpush.bf16.msra.mxu0 %v263
    %276 = vmatpush.bf16.msra.mxu0 %v262
    %277 = vmatmul.bf16.gmra.mxu0 %v267
    %v278 = vpop.f32.mrf.mxu0
    %v279 = vadd.f32 0.0, %v278
    %v280 = vpop.f32.mrf.mxu0
    %281 = vdwg.mxu0
    %v282 = vadd.f32 %v245, %v279
    %v283 = vtanh.pop %v282
    %v284 = vmul.f32 %v282, 0.5
    %v285 = vtanh.pop %v284
    %v286 = vadd.f32 %v285, 1.0
    %v287 = vmul.f32 %v286, 0.5
    %289 = vrot.lane.b32.xlu0 %v283, 32
    %v290 = vpop.permute.xlu0 %289
    %v292 = vmul.f32 %v287, %v290
    %v293 = vsub.f32 1.0, %v287
    %v294 = vmul.f32 %v293, %v237
    %v295 = vadd.f32 %v292, %v294
    %297 = vrot.lane.b32.xlu0 %v295, 96
    %v298 = vpop.permute.xlu0 %297
    %s300 = scalar_lea.vmem [#allocation9], 6
    %301 = vst.msk [vmem:[%s300] sm:$0x3] %vm126, %v298
    %s302 = scalar_lea.vmem [#allocation3], 8
    %v303 = vld [vmem:[%s302] sm:$0x3]
    %v304 = vpack.c.bf16 %v295, %v295
    %v305 = vld [vmem:[#allocation8] sm:$0xf]
    %v306 = vld [vmem:[#allocation8 + $0x4] sm:$0xf]
    %v307 = vld [vmem:[#allocation8 + $0x8] sm:$0xf]
    %v308 = vld [vmem:[#allocation8 + $0xc] sm:$0xf]
    %310 = vrot.lane.b32.xlu0 %v304, 96
    %v311 = vpop.permute.xlu0 %310
    %v316 = vunpack.c.l.b16 %v305
    %v317 = vunpack.c.l.b16 %v306
    %v318 = vunpack.c.l.b16 %v307
    %v319 = vunpack.c.l.b16 %v308
    %v320 = vpack.c.b16 %v317, %v316
    %v321 = vpack.c.b16 %v319, %v318
    %v325 = vsel %vm87, %v311, 0
    %327 = vmatpush.bf16.msra.mxu0 0
    %328 = vmatpush.bf16.msra.mxu0 0
    %329 = vmatpush.bf16.msra.mxu0 0
    %330 = vmatpush.bf16.msra.mxu0 0
    %331 = vmatpush.bf16.msra.mxu0 0
    %332 = vmatpush.bf16.msra.mxu0 0
    %333 = vmatpush.bf16.msra.mxu0 %v321
    %334 = vmatpush.bf16.msra.mxu0 %v320
    %335 = vmatmul.bf16.gmra.mxu0 %v325
    %v336 = vpop.f32.mrf.mxu0
    %v337 = vadd.f32 0.0, %v336
    %v338 = vpop.f32.mrf.mxu0
    %339 = vdwg.mxu0
    %v340 = vadd.f32 %v303, %v337
    %v341 = vtanh.pop %v340
    %v342 = vmul.f32 %v340, 0.5
    %v343 = vtanh.pop %v342
    %v344 = vadd.f32 %v343, 1.0
    %v345 = vmul.f32 %v344, 0.5
    %347 = vrot.lane.b32.xlu0 %v341, 32
    %v348 = vpop.permute.xlu0 %347
    %v350 = vmul.f32 %v345, %v348
    %v351 = vsub.f32 1.0, %v345
    %v352 = vmul.f32 %v351, %v295
    %v353 = vadd.f32 %v350, %v352
    %355 = vrot.lane.b32.xlu0 %v353, 96
    %v356 = vpop.permute.xlu0 %355
    %s358 = scalar_lea.vmem [#allocation9], 8
    %359 = vst.msk [vmem:[%s358] sm:$0x3] %vm126, %v356
    %s360 = scalar_lea.vmem [#allocation3], 10
    %v361 = vld [vmem:[%s360] sm:$0x3]
    %v362 = vpack.c.bf16 %v353, %v353
    %v363 = vld [vmem:[#allocation8] sm:$0xf]
    %v364 = vld [vmem:[#allocation8 + $0x4] sm:$0xf]
    %v365 = vld [vmem:[#allocation8 + $0x8] sm:$0xf]
    %v366 = vld [vmem:[#allocation8 + $0xc] sm:$0xf]
    %368 = vrot.lane.b32.xlu0 %v362, 96
    %v369 = vpop.permute.xlu0 %368
    %v374 = vunpack.c.l.b16 %v363
    %v375 = vunpack.c.l.b16 %v364
    %v376 = vunpack.c.l.b16 %v365
    %v377 = vunpack.c.l.b16 %v366
    %v378 = vpack.c.b16 %v375, %v374
    %v379 = vpack.c.b16 %v377, %v376
    %v383 = vsel %vm87, %v369, 0
    %385 = vmatpush.bf16.msra.mxu0 0
    %386 = vmatpush.bf16.msra.mxu0 0
    %387 = vmatpush.bf16.msra.mxu0 0
    %388 = vmatpush.bf16.msra.mxu0 0
    %389 = vmatpush.bf16.msra.mxu0 0
    %390 = vmatpush.bf16.msra.mxu0 0
    %391 = vmatpush.bf16.msra.mxu0 %v379
    %392 = vmatpush.bf16.msra.mxu0 %v378
    %393 = vmatmul.bf16.gmra.mxu0 %v383
    %v394 = vpop.f32.mrf.mxu0
    %v395 = vadd.f32 0.0, %v394
    %v396 = vpop.f32.mrf.mxu0
    %397 = vdwg.mxu0
    %v398 = vadd.f32 %v361, %v395
    %v399 = vtanh.pop %v398
    %v400 = vmul.f32 %v398, 0.5
    %v401 = vtanh.pop %v400
    %v402 = vadd.f32 %v401, 1.0
    %v403 = vmul.f32 %v402, 0.5
    %405 = vrot.lane.b32.xlu0 %v399, 32
    %v406 = vpop.permute.xlu0 %405
    %v408 = vmul.f32 %v403, %v406
    %v409 = vsub.f32 1.0, %v403
    %v410 = vmul.f32 %v409, %v353
    %v411 = vadd.f32 %v408, %v410
    %413 = vrot.lane.b32.xlu0 %v411, 96
    %v414 = vpop.permute.xlu0 %413
    %s416 = scalar_lea.vmem [#allocation9], 10
    %417 = vst.msk [vmem:[%s416] sm:$0x3] %vm126, %v414
    %s418 = scalar_lea.vmem [#allocation3], 12
    %v419 = vld [vmem:[%s418] sm:$0x3]
    %v420 = vpack.c.bf16 %v411, %v411
    %v421 = vld [vmem:[#allocation8] sm:$0xf]
    %v422 = vld [vmem:[#allocation8 + $0x4] sm:$0xf]
    %v423 = vld [vmem:[#allocation8 + $0x8] sm:$0xf]
    %v424 = vld [vmem:[#allocation8 + $0xc] sm:$0xf]
    %426 = vrot.lane.b32.xlu0 %v420, 96
    %v427 = vpop.permute.xlu0 %426
    %v432 = vunpack.c.l.b16 %v421
    %v433 = vunpack.c.l.b16 %v422
    %v434 = vunpack.c.l.b16 %v423
    %v435 = vunpack.c.l.b16 %v424
    %v436 = vpack.c.b16 %v433, %v432
    %v437 = vpack.c.b16 %v435, %v434
    %v441 = vsel %vm87, %v427, 0
    %443 = vmatpush.bf16.msra.mxu0 0
    %444 = vmatpush.bf16.msra.mxu0 0
    %445 = vmatpush.bf16.msra.mxu0 0
    %446 = vmatpush.bf16.msra.mxu0 0
    %447 = vmatpush.bf16.msra.mxu0 0
    %448 = vmatpush.bf16.msra.mxu0 0
    %449 = vmatpush.bf16.msra.mxu0 %v437
    %450 = vmatpush.bf16.msra.mxu0 %v436
    %451 = vmatmul.bf16.gmra.mxu0 %v441
    %v452 = vpop.f32.mrf.mxu0
    %v453 = vadd.f32 0.0, %v452
    %v454 = vpop.f32.mrf.mxu0
    %455 = vdwg.mxu0
    %v456 = vadd.f32 %v419, %v453
    %v457 = vtanh.pop %v456
    %v458 = vmul.f32 %v456, 0.5
    %v459 = vtanh.pop %v458
    %v460 = vadd.f32 %v459, 1.0
    %v461 = vmul.f32 %v460, 0.5
    %463 = vrot.lane.b32.xlu0 %v457, 32
    %v464 = vpop.permute.xlu0 %463
    %v466 = vmul.f32 %v461, %v464
    %v467 = vsub.f32 1.0, %v461
    %v468 = vmul.f32 %v467, %v411
    %v469 = vadd.f32 %v466, %v468
    %471 = vrot.lane.b32.xlu0 %v469, 96
    %v472 = vpop.permute.xlu0 %471
    %s474 = scalar_lea.vmem [#allocation9], 12
    %475 = vst.msk [vmem:[%s474] sm:$0x3] %vm126, %v472
    %s476 = scalar_lea.vmem [#allocation3], 14
    %v477 = vld [vmem:[%s476] sm:$0x3]
    %v478 = vpack.c.bf16 %v469, %v469
    %v479 = vld [vmem:[#allocation8] sm:$0xf]
    %v480 = vld [vmem:[#allocation8 + $0x4] sm:$0xf]
    %v481 = vld [vmem:[#allocation8 + $0x8] sm:$0xf]
    %v482 = vld [vmem:[#allocation8 + $0xc] sm:$0xf]
    %484 = vrot.lane.b32.xlu0 %v478, 96
    %v485 = vpop.permute.xlu0 %484
    %v490 = vunpack.c.l.b16 %v479
    %v491 = vunpack.c.l.b16 %v480
    %v492 = vunpack.c.l.b16 %v481
    %v493 = vunpack.c.l.b16 %v482
    %v494 = vpack.c.b16 %v491, %v490
    %v495 = vpack.c.b16 %v493, %v492
    %v499 = vsel %vm87, %v485, 0
    %501 = vmatpush.bf16.msra.mxu0 0
    %502 = vmatpush.bf16.msra.mxu0 0
    %503 = vmatpush.bf16.msra.mxu0 0
    %504 = vmatpush.bf16.msra.mxu0 0
    %505 = vmatpush.bf16.msra.mxu0 0
    %506 = vmatpush.bf16.msra.mxu0 0
    %507 = vmatpush.bf16.msra.mxu0 %v495
    %508 = vmatpush.bf16.msra.mxu0 %v494
    %509 = vmatmul.bf16.gmra.mxu0 %v499
    %v510 = vpop.f32.mrf.mxu0
    %v511 = vadd.f32 0.0, %v510
    %v512 = vpop.f32.mrf.mxu0
    %513 = vdwg.mxu0
    %v514 = vadd.f32 %v477, %v511
    %v515 = vtanh.pop %v514
    %v516 = vmul.f32 %v514, 0.5
    %v517 = vtanh.pop %v516
    %v518 = vadd.f32 %v517, 1.0
    %v519 = vmul.f32 %v518, 0.5
    %521 = vrot.lane.b32.xlu0 %v515, 32
    %v522 = vpop.permute.xlu0 %521
    %v524 = vmul.f32 %v519, %v522
    %v525 = vsub.f32 1.0, %v519
    %v526 = vmul.f32 %v525, %v469
    %v527 = vadd.f32 %v524, %v526
    %529 = vrot.lane.b32.xlu0 %v527, 96
    %v530 = vpop.permute.xlu0 %529
    %s532 = scalar_lea.vmem [#allocation9], 14
    %533 = vst.msk [vmem:[%s532] sm:$0x3] %vm126, %v530
    %534 = vst.msk [vmem:[#allocation2] sm:$0x3] %vm126, %v530
    // Predicated region
    $region30: #{tpu_custom_call.1} parent=1 // pred_check
      _
    $region31: #{tpu_custom_call.1} parent=1 // pred_check_branch
      %536 = sbr.rel (0) target = $region33
    $region32: #{tpu_custom_call.1} parent=1 // pred_region
      %538 = vsyncadd [#allocation5], 0
      %s539 = sshll.u32 [#allocation9], 4
      %s540 = int_to_ptr.vmem [resolvable:$true] %s539
      %s541 = sshll.u32 %s3, 4
      %s542 = int_to_ptr.hbm [resolvable:$true] %s541
      %547 = dma.vmem_to_hbm [thread:$0]  %s540, 256, %s542, [#allocation5], 32, 32, 2
    $region33: #{tpu_custom_call.1} parent=1 // pred_fallthru
      _
    // Predicated region
    $region34: #{tpu_custom_call.1} parent=1 // pred_check
      _
    $region35: #{tpu_custom_call.1} parent=1 // pred_check_branch
      %549 = sbr.rel (0) target = $region37
    $region36: #{tpu_custom_call.1} parent=1 // pred_region
      %551 = dma.done [#allocation5], 256
    $region37: #{tpu_custom_call.1} parent=1 // pred_fallthru
      _
    %552 = vsyncpa [#allocation4], 1
    %553 = vsyncpa [#allocation7], 1
    %554 = vsyncpa [#allocation5], 1

</llo_original>
